<compile_context>
chip_gen: v7x
topology: tpu7x:2x2x1
jax: 0.10.0
libtpu: 0.0.40
codegen_flags: <defaults>
</compile_context>

<pallas_src>
import functools

import jax
import jax.numpy as jnp
from jax.experimental import pallas as pl
from jax.experimental.pallas import tpu as pltpu

IGNORE_INDEX = -100

# Max number of independent row-range chunks (leading "parallel" grid axis).
# 2 matches the TensorCore count of dual-TC chips (v7x); on 1-TC chips the
# second chunk just runs serially with negligible overhead.
_MAX_CHUNKS = 2


def _ce_kernel(x_ref, t_ref, out_ref, tot_ref, cnt_ref, *,
               n_total, tile_n, tiles_per_chunk):
    """One (tile_n, C) row tile: accumulate this chunk's NLL sum and count."""
    i = pl.program_id(0)        # chunk (parallel; sharded across TCs on v7x)
    j = pl.program_id(1)        # row tile within chunk (accumulating axis)

    @pl.when(j == 0)
    def _init():
        tot_ref[...] = jnp.zeros_like(tot_ref)
        cnt_ref[...] = jnp.zeros_like(cnt_ref)

    x = x_ref[...]              # native dtype (bf16 stays bf16 through HBM+VPU)
    t = t_ref[...]              # (tile_n, 1) int32
    tn, c = x.shape

    # Global row index of each sublane; masks padded tail rows and padded
    # grid positions (whose index_map was clamped onto the last real block).
    tile_idx = i * tiles_per_chunk + j
    row = jax.lax.broadcasted_iota(jnp.int32, (tn, 1), 0) + tile_idx * tile_n
    valid = jnp.logical_and(row < n_total, t != IGNORE_INDEX)        # (tn, 1)

    # Logit at the target class: compare + select + lane reduce in the native
    # dtype (exact — only one surviving term per row), then per-row upcast.
    col = jax.lax.broadcasted_iota(jnp.int32, (tn, c), 1)
    picked = jnp.sum(jnp.where(col == t, x, jnp.zeros_like(x)),
                     axis=-1, keepdims=True).astype(jnp.float32)     # (tn, 1)

    # Numerically stable log-sum-exp: row max in native dtype (exact), upcast
    # only for the exp/sum accumulation to limit f32 temp / vreg pressure.
    m = jnp.max(x, axis=-1, keepdims=True)                           # native
    s = jnp.sum(jnp.exp((x - m).astype(jnp.float32)),
                axis=-1, keepdims=True)                              # f32
    lse = m.astype(jnp.float32) + jnp.log(s)                         # (tn, 1)

    per_row = jnp.where(valid, lse - picked, 0.0)                    # select:
    tot_ref[...] = tot_ref[...] + jnp.sum(per_row)                   # NaN-safe
    cnt_ref[...] = cnt_ref[...] + jnp.sum(valid.astype(jnp.float32))

    @pl.when(j == pl.num_programs(1) - 1)
    def _finalize():
        # Flush this chunk's (total, count) partial into its lane-padded
        # (8, 128) output block: [0, 0] = total, [0, 1] = count, rest 0.
        r = jax.lax.broadcasted_iota(jnp.int32, out_ref.shape, 0)
        l = jax.lax.broadcasted_iota(jnp.int32, out_ref.shape, 1)
        tot = tot_ref[0, 0]
        cnt = cnt_ref[0, 0]
        out_ref[...] = jnp.where((r == 0) & (l == 0), tot,
                                 jnp.where((r == 0) & (l == 1), cnt, 0.0))


def _hw_vmem_limit():
    """Scoped-VMEM request: real chip capacity minus headroom (gen-aware)."""
    try:
        cap = int(pltpu.get_tpu_info().vmem_capacity_bytes)
    except Exception:
        cap = 64 * 1024 * 1024          # conservative (v7x-sized) fallback
    # Leave ~16 MiB headroom; never ask beyond 100 MiB even on 128 MiB parts.
    return max(16 * 1024 * 1024, min(cap - 16 * 1024 * 1024, 100 * 1024 * 1024))


def _choose_tile_n(n, c, itemsize, vmem_limit):
    """Largest row tile (multiple of 8) whose pipelined footprint fits VMEM."""
    per_row = (2 * c * itemsize        # double-buffered native-dtype logits
               + 2 * 128 * 4           # double-buffered lane-padded (.,1) tgts
               + 2 * c * 4)            # in-kernel f32 exp/sum temps (estimate)
    budget = max(1, vmem_limit - (4 << 20))   # compiler-internal scratch slack
    tile = budget // per_row
    # Keep >= ~4 row tiles when n allows, so the parallel chunk split and the
    # double-buffered pipeline both have work to overlap.
    tile = min(tile, max(8, (n + 3) // 4))
    if tile >= n:
        return n                       # full-extent block is always legal
    return max(8, (tile // 8) * 8)


def cross_entropy_pallas(logits, targets, tile_n=None, num_chunks=None):
    """logits: (N, C) float (any dtype), targets: (N,) int. Returns scalar f32."""
    n, c = logits.shape
    itemsize = jnp.dtype(logits.dtype).itemsize
    t2d = targets.reshape(n, 1).astype(jnp.int32)

    vmem_limit = _hw_vmem_limit()
    if tile_n is None:
        tile_n = _choose_tile_n(n, c, itemsize, vmem_limit)
    if tile_n >= n:
        tile_n = n
    elif tile_n % 8 != 0:
        tile_n = max(8, (tile_n // 8) * 8)

    num_tiles = pl.cdiv(n, tile_n)
    if num_chunks is None:
        num_chunks = _MAX_CHUNKS if num_tiles >= _MAX_CHUNKS else 1
    num_chunks = max(1, min(num_chunks, num_tiles))
    tiles_per_chunk = pl.cdiv(num_tiles, num_chunks)
    grid = (num_chunks, tiles_per_chunk)

    last_blk = num_tiles - 1

    def _blk(i, j):
        # Clamp padded grid positions (num_chunks*tiles_per_chunk > num_tiles)
        # onto the last real block; the in-kernel row mask zeroes their
        # contribution, so the re-read data is never accumulated.
        return jnp.minimum(i * tiles_per_chunk + j, last_blk)

    cost = pl.CostEstimate(
        flops=6 * n * c,
        transcendentals=n * c + n,
        bytes_accessed=n * c * itemsize + n * 4 + num_chunks * 8 * 128 * 4,
    )

    kernel = functools.partial(_ce_kernel, n_total=n, tile_n=tile_n,
                               tiles_per_chunk=tiles_per_chunk)

    out = pl.pallas_call(
        kernel,
        out_shape=jax.ShapeDtypeStruct((num_chunks * 8, 128), jnp.float32),
        grid=grid,
        in_specs=[
            pl.BlockSpec((tile_n, c), lambda i, j: (_blk(i, j), 0)),
            pl.BlockSpec((tile_n, 1), lambda i, j: (_blk(i, j), 0)),
        ],
        out_specs=pl.BlockSpec((8, 128), lambda i, j: (i, 0)),
        scratch_shapes=[
            pltpu.VMEM((1, 1), jnp.float32),   # per-chunk running NLL total
            pltpu.VMEM((1, 1), jnp.float32),   # per-chunk running valid count
        ],
        compiler_params=pltpu.CompilerParams(
            dimension_semantics=("parallel", "arbitrary"),
            vmem_limit_bytes=int(vmem_limit),
        ),
        cost_estimate=cost,
    )(logits, t2d)                             # note: no wrapper upcast

    partials = out.reshape(num_chunks, 8, 128)
    total = jnp.sum(partials[:, 0, 0])
    count = jnp.sum(partials[:, 0, 1])
    # 'mean' over non-ignored rows; all-ignored -> 0/0 -> NaN matches PyTorch.
    return total / count


def cross_entropy_ref(logits, targets):
    """Pure-JAX reference matching F.cross_entropy semantics."""
    logits = logits.astype(jnp.float32)
    logp = jax.nn.log_softmax(logits, axis=-1)
    valid = targets != IGNORE_INDEX
    safe_t = jnp.where(valid, targets, 0)
    picked = jnp.take_along_axis(logp, safe_t[:, None], axis=-1)[:, 0]
    nll = jnp.where(valid, -picked, 0.0)
    return jnp.sum(nll) / jnp.sum(valid.astype(jnp.float32))


if __name__ == "__main__":
    key = jax.random.PRNGKey(0)
    k1, k2 = jax.random.split(key)

    # N deliberately not a multiple of the 8-row tile -> exercises the
    # padded-tail row mask and the clamped padded grid position; two ignored
    # targets exercise ignore_index.
    N, C = 20, 32
    logits = jax.random.normal(k1, (N, C), dtype=jnp.float32)
    targets = jax.random.randint(k2, (N,), 0, C, dtype=jnp.int32)
    targets = targets.at[3].set(IGNORE_INDEX)
    targets = targets.at[17].set(IGNORE_INDEX)

    ref = cross_entropy_ref(logits, targets)

    # Multi-tile path: 3 row tiles -> 2 parallel chunks, padded tail + clamp.
    loss = cross_entropy_pallas(logits, targets, tile_n=8)
    jax.block_until_ready(loss)
    assert jnp.allclose(loss, ref, atol=1e-5, rtol=1e-5), (loss, ref)

    # Auto-tiled path (generation-aware tile choice).
    loss2 = cross_entropy_pallas(logits, targets)
    jax.block_until_ready(loss2)
    assert jnp.allclose(loss2, ref, atol=1e-5, rtol=1e-5), (loss2, ref)

    # Single full-extent block / single chunk path.
    loss3 = cross_entropy_pallas(logits, targets, tile_n=64)
    jax.block_until_ready(loss3)
    assert jnp.allclose(loss3, ref, atol=1e-5, rtol=1e-5), (loss3, ref)

    # bf16 inputs exercise the native-dtype compare/select + f32-accum path.
    logits_bf16 = logits.astype(jnp.bfloat16)
    ref_bf16 = cross_entropy_ref(logits_bf16, targets)
    loss4 = cross_entropy_pallas(logits_bf16, targets, tile_n=16)
    jax.block_until_ready(loss4)
    assert jnp.allclose(loss4, ref_bf16, atol=5e-2, rtol=5e-2), (loss4, ref_bf16)

    print("KERNEL_OK")
</pallas_src>

<mosaic_0001>
module attributes {stable_mosaic.version = 11 : i64} {
  func.func @_ce_kernel(%arg0: i32, %arg1: i32, %arg2: memref<8x32xf32, #tpu.memory_space<vmem>>, %arg3: memref<8x1xi32, #tpu.memory_space<vmem>>, %arg4: memref<8x128xf32, #tpu.memory_space<vmem>>, %arg5: memref<1x1xf32, #tpu.memory_space<vmem>>, %arg6: memref<1x1xf32, #tpu.memory_space<vmem>>) attributes {dimension_semantics = [#tpu.dimension_semantics<parallel>, #tpu.dimension_semantics<arbitrary>], iteration_bounds = array<i64: 2, 2>, scalar_prefetch = 0 : i64, scratch_operands = 2 : i64, tpu.core_type = #tpu.core_type<tc>, window_params = [{transform_indices = @transform_0, window_bounds = array<i64: 8, 32>}, {transform_indices = @transform_1, window_bounds = array<i64: 8, 1>}, {transform_indices = @transform_2, window_bounds = array<i64: 8, 128>}]} {
    %c0_i32 = arith.constant 0 : i32
    %0 = arith.cmpi eq, %arg1, %c0_i32 : i32
    %1 = arith.extui %0 : i1 to i32
    %c0_i32_0 = arith.constant 0 : i32
    %2 = arith.cmpi ne, %1, %c0_i32_0 : i32
    scf.if %2 {
      %cst_19 = arith.constant 0.000000e+00 : f32
      %56 = vector.broadcast %cst_19 : f32 to vector<1x1xf32>
      %c0_20 = arith.constant 0 : index
      %c0_21 = arith.constant 0 : index
      %57 = vector.load %arg5[%c0_20, %c0_21] : memref<1x1xf32, #tpu.memory_space<vmem>>, vector<1x1xf32>
      tpu.vector_store %arg5[%c0_20, %c0_21], %56 {strides = array<i32>} : memref<1x1xf32, #tpu.memory_space<vmem>>, vector<1x1xf32>,
      %cst_22 = arith.constant 0.000000e+00 : f32
      %58 = vector.broadcast %cst_22 : f32 to vector<1x1xf32>
      %c0_23 = arith.constant 0 : index
      %c0_24 = arith.constant 0 : index
      %59 = vector.load %arg6[%c0_23, %c0_24] : memref<1x1xf32, #tpu.memory_space<vmem>>, vector<1x1xf32>
      tpu.vector_store %arg6[%c0_23, %c0_24], %58 {strides = array<i32>} : memref<1x1xf32, #tpu.memory_space<vmem>>, vector<1x1xf32>,
    } else {
    }
    %c0 = arith.constant 0 : index
    %c0_1 = arith.constant 0 : index
    %3 = vector.load %arg2[%c0, %c0_1] : memref<8x32xf32, #tpu.memory_space<vmem>>, vector<8x32xf32>
    %c0_2 = arith.constant 0 : index
    %c0_3 = arith.constant 0 : index
    %4 = vector.load %arg3[%c0_2, %c0_3] : memref<8x1xi32, #tpu.memory_space<vmem>>, vector<8x1xi32>
    %c2_i32 = arith.constant 2 : i32
    %5 = arith.muli %arg0, %c2_i32 : i32
    %6 = arith.addi %5, %arg1 : i32
    %7 = tpu.iota {dimensions = array<i32: 0>} : vector<8x1xi32>
    %c8_i32 = arith.constant 8 : i32
    %8 = arith.muli %6, %c8_i32 : i32
    %9 = vector.broadcast %8 : i32 to vector<8x1xi32>
    %10 = arith.addi %7, %9 : vector<8x1xi32>
    %c20_i32 = arith.constant 20 : i32
    %11 = vector.broadcast %c20_i32 : i32 to vector<8x1xi32>
    %12 = arith.cmpi slt, %10, %11 : vector<8x1xi32>
    %c-100_i32 = arith.constant -100 : i32
    %13 = vector.broadcast %c-100_i32 : i32 to vector<8x1xi32>
    %14 = arith.cmpi ne, %4, %13 : vector<8x1xi32>
    %15 = arith.andi %12, %14 : vector<8x1xi1>
    %16 = tpu.iota {dimensions = array<i32: 1>} : vector<8x32xi32>
    %17 = vector.broadcast %4 : vector<8x1xi32> to vector<8x32xi32>
    %18 = arith.cmpi eq, %16, %17 : vector<8x32xi32>
    %cst = arith.constant 0.000000e+00 : f32
    %19 = vector.broadcast %cst : f32 to vector<8x32xf32>
    %20 = arith.select %18, %3, %19 : vector<8x32xi1>, vector<8x32xf32>
    %cst_4 = arith.constant dense<0.000000e+00> : vector<8xf32>
    %21 = vector.multi_reduction <add>, %20, %cst_4 [1] : vector<8x32xf32> to vector<8xf32>
    %22 = vector.shape_cast %21 : vector<8xf32> to vector<8x1xf32>
    %cst_5 = arith.constant dense<0xFF800000> : vector<8xf32>
    %23 = vector.multi_reduction <maximumf>, %3, %cst_5 [1] : vector<8x32xf32> to vector<8xf32>
    %24 = vector.shape_cast %23 : vector<8xf32> to vector<8x1xf32>
    %25 = vector.broadcast %24 : vector<8x1xf32> to vector<8x32xf32>
    %26 = arith.subf %3, %25 : vector<8x32xf32>
    %27 = math.exp %26 : vector<8x32xf32>
    %cst_6 = arith.constant dense<0.000000e+00> : vector<8xf32>
    %28 = vector.multi_reduction <add>, %27, %cst_6 [1] : vector<8x32xf32> to vector<8xf32>
    %29 = vector.shape_cast %28 : vector<8xf32> to vector<8x1xf32>
    %30 = math.log %29 : vector<8x1xf32>
    %31 = arith.addf %24, %30 : vector<8x1xf32>
    %32 = arith.subf %31, %22 : vector<8x1xf32>
    %cst_7 = arith.constant 0.000000e+00 : f32
    %33 = vector.broadcast %cst_7 : f32 to vector<8x1xf32>
    %34 = arith.select %15, %32, %33 : vector<8x1xi1>, vector<8x1xf32>
    %c0_8 = arith.constant 0 : index
    %c0_9 = arith.constant 0 : index
    %35 = vector.load %arg5[%c0_8, %c0_9] : memref<1x1xf32, #tpu.memory_space<vmem>>, vector<1x1xf32>
    %36 = vector.shape_cast %34 : vector<8x1xf32> to vector<1x8x1xf32>
    %cst_10 = arith.constant dense<0.000000e+00> : vector<1xf32>
    %37 = vector.multi_reduction <add>, %36, %cst_10 [1, 2] : vector<1x8x1xf32> to vector<1xf32>
    %38 = vector.shape_cast %37 : vector<1xf32> to vector<1x1x1xf32>
    %39 = vector.extract %38[0, 0, 0] : f32 from vector<1x1x1xf32>
    %40 = vector.broadcast %39 : f32 to vector<1x1xf32>
    %41 = arith.addf %35, %40 : vector<1x1xf32>
    %c0_11 = arith.constant 0 : index
    %c0_12 = arith.constant 0 : index
    %42 = vector.load %arg5[%c0_11, %c0_12] : memref<1x1xf32, #tpu.memory_space<vmem>>, vector<1x1xf32>
    tpu.vector_store %arg5[%c0_11, %c0_12], %41 {strides = array<i32>} : memref<1x1xf32, #tpu.memory_space<vmem>>, vector<1x1xf32>,
    %c0_13 = arith.constant 0 : index
    %c0_14 = arith.constant 0 : index
    %43 = vector.load %arg6[%c0_13, %c0_14] : memref<1x1xf32, #tpu.memory_space<vmem>>, vector<1x1xf32>
    %44 = arith.extui %15 : vector<8x1xi1> to vector<8x1xi32>
    %45 = arith.sitofp %44 : vector<8x1xi32> to vector<8x1xf32>
    %46 = vector.shape_cast %45 : vector<8x1xf32> to vector<1x8x1xf32>
    %cst_15 = arith.constant dense<0.000000e+00> : vector<1xf32>
    %47 = vector.multi_reduction <add>, %46, %cst_15 [1, 2] : vector<1x8x1xf32> to vector<1xf32>
    %48 = vector.shape_cast %47 : vector<1xf32> to vector<1x1x1xf32>
    %49 = vector.extract %48[0, 0, 0] : f32 from vector<1x1x1xf32>
    %50 = vector.broadcast %49 : f32 to vector<1x1xf32>
    %51 = arith.addf %43, %50 : vector<1x1xf32>
    %c0_16 = arith.constant 0 : index
    %c0_17 = arith.constant 0 : index
    %52 = vector.load %arg6[%c0_16, %c0_17] : memref<1x1xf32, #tpu.memory_space<vmem>>, vector<1x1xf32>
    tpu.vector_store %arg6[%c0_16, %c0_17], %51 {strides = array<i32>} : memref<1x1xf32, #tpu.memory_space<vmem>>, vector<1x1xf32>,
    %c1_i32 = arith.constant 1 : i32
    %53 = arith.cmpi eq, %arg1, %c1_i32 : i32
    %54 = arith.extui %53 : i1 to i32
    %c0_i32_18 = arith.constant 0 : i32
    %55 = arith.cmpi ne, %54, %c0_i32_18 : i32
    scf.if %55 {
      %56 = tpu.iota {dimensions = array<i32: 0>} : vector<8x128xi32>
      %57 = tpu.iota {dimensions = array<i32: 1>} : vector<8x128xi32>
      %c0_19 = arith.constant 0 : index
      %c0_20 = arith.constant 0 : index
      %58 = vector.load %arg5[%c0_19, %c0_20] : memref<1x1xf32, #tpu.memory_space<vmem>>, vector<1x1xf32>
      %59 = vector.extract %58[0, 0] : f32 from vector<1x1xf32>
      %c0_21 = arith.constant 0 : index
      %c0_22 = arith.constant 0 : index
      %60 = vector.load %arg6[%c0_21, %c0_22] : memref<1x1xf32, #tpu.memory_space<vmem>>, vector<1x1xf32>
      %61 = vector.extract %60[0, 0] : f32 from vector<1x1xf32>
      %c0_i32_23 = arith.constant 0 : i32
      %62 = vector.broadcast %c0_i32_23 : i32 to vector<8x128xi32>
      %63 = arith.cmpi eq, %56, %62 : vector<8x128xi32>
      %c0_i32_24 = arith.constant 0 : i32
      %64 = vector.broadcast %c0_i32_24 : i32 to vector<8x128xi32>
      %65 = arith.cmpi eq, %57, %64 : vector<8x128xi32>
      %66 = arith.andi %63, %65 : vector<8x128xi1>
      %c0_i32_25 = arith.constant 0 : i32
      %67 = vector.broadcast %c0_i32_25 : i32 to vector<8x128xi32>
      %68 = arith.cmpi eq, %56, %67 : vector<8x128xi32>
      %c1_i32_26 = arith.constant 1 : i32
      %69 = vector.broadcast %c1_i32_26 : i32 to vector<8x128xi32>
      %70 = arith.cmpi eq, %57, %69 : vector<8x128xi32>
      %71 = arith.andi %68, %70 : vector<8x128xi1>
      %cst_27 = arith.constant 0.000000e+00 : f32
      %72 = vector.broadcast %61 : f32 to vector<8x128xf32>
      %73 = vector.broadcast %cst_27 : f32 to vector<8x128xf32>
      %74 = arith.select %71, %72, %73 : vector<8x128xi1>, vector<8x128xf32>
      %75 = vector.broadcast %59 : f32 to vector<8x128xf32>
      %76 = arith.select %66, %75, %74 : vector<8x128xi1>, vector<8x128xf32>
      %c0_28 = arith.constant 0 : index
      %c0_29 = arith.constant 0 : index
      %77 = vector.load %arg4[%c0_28, %c0_29] : memref<8x128xf32, #tpu.memory_space<vmem>>, vector<8x128xf32>
      tpu.vector_store %arg4[%c0_28, %c0_29], %76 {strides = array<i32>} : memref<8x128xf32, #tpu.memory_space<vmem>>, vector<8x128xf32>,
    } else {
    }
    return
  }
  func.func @transform_0(%arg0: i32, %arg1: i32) -> (i32, i32) {
    %c2_i32 = arith.constant 2 : i32
    %0 = arith.muli %arg0, %c2_i32 : i32
    %1 = arith.addi %0, %arg1 : i32
    %c2_i32_0 = arith.constant 2 : i32
    %2 = arith.minsi %1, %c2_i32_0 : i32
    %c0_i32 = arith.constant 0 : i32
    %c0_i32_1 = arith.constant 0 : i32
    return %2, %c0_i32 : i32, i32
  }
  func.func @transform_1(%arg0: i32, %arg1: i32) -> (i32, i32) {
    %c2_i32 = arith.constant 2 : i32
    %0 = arith.muli %arg0, %c2_i32 : i32
    %1 = arith.addi %0, %arg1 : i32
    %c2_i32_0 = arith.constant 2 : i32
    %2 = arith.minsi %1, %c2_i32_0 : i32
    %c0_i32 = arith.constant 0 : i32
    %c0_i32_1 = arith.constant 0 : i32
    return %2, %c0_i32 : i32, i32
  }
  func.func @transform_2(%arg0: i32, %arg1: i32) -> (i32, i32) {
    %c0_i32 = arith.constant 0 : i32
    %c0_i32_0 = arith.constant 0 : i32
    return %arg0, %c0_i32 : i32, i32
  }
}

</mosaic_0001>

<llo_original>
// kernel: tpu_custom_call.1
$region0: #{tpu_custom_call.1}
  #allocation0 [shape = 'u32[]', space=smem, size = 0x4, offset = 0x4, fixed_abs, tag = 'smem constant byte address 0x4 - core index']
  #allocation1 [shape = 'u32[144,128]{1,0:T(1,128)}', space=vmem, size = 0x12000, scoped, tag = 'internal scratch']
  #allocation2 [shape = 'f32[1,1]{1,0:T(1,128)}', space=vmem, size = 0x200, scoped, tag = 'scratch operand']
  #allocation3 [shape = 'f32[1,1]{1,0:T(1,128)}', space=vmem, size = 0x200, scoped, tag = 'scratch operand']
  %s0 = inlined_call_operand.vmem [shape: f32[20,32], index: 0, kind: input, shape index: {}]
  %s1 = inlined_call_operand.vmem [shape: s32[20,1], index: 1, kind: input, shape index: {}]
  %s2 = inlined_call_operand.hbm [shape: f32[16,128], index: 2, kind: output, shape index: {}]
  %s3 = sld [smem:[#allocation0]]
  $region49: #{tpu_custom_call.1} parent=0
    _
  %s5 = ssub.s32 1, %s3
  %s6 = scalar_select 0, %s5, %s3
  $region1: #{tpu_custom_call.1} parent=0
    #allocation4 [shape = 'u8[8192]{0}', space=vmem, size = 0x2000, scoped, tag = 'output window, operand 0']
    #allocation5 [shape = 's32[2]{0}', space=sflag, size = 0x8, scoped, tag = 'scoped memory for tpu_custom_call.1']
    %7 = vsyncpa [#allocation5], 0
    %s8 = scalar_lea.sflag [#allocation5], 1
    %9 = vsyncpa %s8, 0
    loop: start=0, step=1, limit=6
    $region2: #{tpu_custom_call.1} parent=1 // loop_pre_header
      _
    $region3: #{tpu_custom_call.1} parent=1 // loop_header
      %s11 = sphi 0, %s15
      %p12 = scmp.ge.s32.totalorder %s11, 6
      %s18 = sphi 0, %s30
      %s19 = sphi 0, %s26
      %s20 = sphi 0, %s18
      %s21 = sphi 0, %s19
      %s22 = sphi 0, %s20
      %s23 = sphi 0, %s21
      %s41 = sphi 0, %s43
      %s44 = sphi 0, %s41
      %s45 = sphi 0, %s44
      %s61 = sphi 0, %s45
      %s75 = sphi 0, %s77
      %s78 = sphi 0, %s75
      %s79 = sphi 0, %s78
      %s95 = sphi 0, %s79
      %s101 = sphi 0, %s103
      %s104 = sphi 0, %s101
      %s105 = sphi 0, %s104
      %s121 = sphi 0, %s105
    $region4: #{tpu_custom_call.1} parent=1 // loop_header_branch
      %14 = sbr.rel (%p12) target = $region8
    $region5: #{tpu_custom_call.1} parent=1 // loop_body
      %s16 = ssub.s32 %s11, 1
      %s17 = ssub.s32 %s11, 2
      %s24 = sadd.s32 1, %s19
      %p25 = scmp.ge.s32.totalorder %s24, 2
      %s26 = scalar_select %p25, 0, %s24
      %s27 = sadd.s32 1, %s18
      %s28 = scalar_select %p25, %s27, %s18
      %p29 = scmp.ge.s32.totalorder %s28, 2
      %s30 = scalar_select %p29, 0, %s28
      %s31 = smul.u32 %s18, 2
      %s32 = sadd.s32 %s31, %s19
      %p33 = scmp.lt.s32.totalorder %s32, 2
      %s34 = scalar_select %p33, %s32, 2
      %s35 = smul.u32 %s30, 2
      %s36 = sadd.s32 %s35, %s26
      %p37 = scmp.lt.s32.totalorder %s36, 2
      %s38 = scalar_select %p37, %s36, 2
      %s39 = ssub.s32 %s34, %s38
      %p40 = scmp.eq.s32.totalorder %s39, 0
      %s42 = sadd.s32 %s41, 1
      %s43 = scalar_select %p40, %s41, %s42
      %p46 = pneg %p40
      %p47 = scmp.eq.s32.totalorder %s11, 3
      %p48 = por %p46, %p47
      %p49 = scmp.ne.s32.totalorder %s41, %s44
      %p50 = scmp.eq.s32.totalorder %s11, 0
      %p51 = por %p49, %p50
      %p52 = scmp.ne.s32.totalorder %s41, %s44
      %p53 = scmp.eq.s32.totalorder %s16, 3
      %p54 = por %p52, %p53
      %p55 = scmp.ne.s32.totalorder %s44, %s45
      %p56 = scmp.eq.s32.totalorder %s16, 0
      %p57 = por %p55, %p56
      %p58 = scmp.ne.s32.totalorder %s44, %s45
      %p59 = scmp.eq.s32.totalorder %s17, 3
      %p60 = por %p58, %p59
      %p62 = scmp.ne.s32.totalorder %s45, %s61
      %p63 = scmp.eq.s32.totalorder %s17, 0
      %p64 = por %p62, %p63
      %s65 = smul.u32 %s18, 2
      %s66 = sadd.s32 %s65, %s19
      %p67 = scmp.lt.s32.totalorder %s66, 2
      %s68 = scalar_select %p67, %s66, 2
      %s69 = smul.u32 %s30, 2
      %s70 = sadd.s32 %s69, %s26
      %p71 = scmp.lt.s32.totalorder %s70, 2
      %s72 = scalar_select %p71, %s70, 2
      %s73 = ssub.s32 %s68, %s72
      %p74 = scmp.eq.s32.totalorder %s73, 0
      %s76 = sadd.s32 %s75, 1
      %s77 = scalar_select %p74, %s75, %s76
      %p80 = pneg %p74
      %p81 = scmp.eq.s32.totalorder %s11, 3
      %p82 = por %p80, %p81
      %p83 = scmp.ne.s32.totalorder %s75, %s78
      %p84 = scmp.eq.s32.totalorder %s11, 0
      %p85 = por %p83, %p84
      %p86 = scmp.ne.s32.totalorder %s75, %s78
      %p87 = scmp.eq.s32.totalorder %s16, 3
      %p88 = por %p86, %p87
      %p89 = scmp.ne.s32.totalorder %s78, %s79
      %p90 = scmp.eq.s32.totalorder %s16, 0
      %p91 = por %p89, %p90
      %p92 = scmp.ne.s32.totalorder %s78, %s79
      %p93 = scmp.eq.s32.totalorder %s17, 3
      %p94 = por %p92, %p93
      %p96 = scmp.ne.s32.totalorder %s79, %s95
      %p97 = scmp.eq.s32.totalorder %s17, 0
      %p98 = por %p96, %p97
      %s99 = ssub.s32 %s18, %s30
      %p100 = scmp.eq.s32.totalorder %s99, 0
      %s102 = sadd.s32 %s101, 1
      %s103 = scalar_select %p100, %s101, %s102
      %p106 = pneg %p100
      %p107 = scmp.eq.s32.totalorder %s11, 3
      %p108 = por %p106, %p107
      %p109 = scmp.ne.s32.totalorder %s101, %s104
      %p110 = scmp.eq.s32.totalorder %s11, 0
      %p111 = por %p109, %p110
      %p112 = scmp.ne.s32.totalorder %s101, %s104
      %p113 = scmp.eq.s32.totalorder %s16, 3
      %p114 = por %p112, %p113
      %p115 = scmp.ne.s32.totalorder %s104, %s105
      %p116 = scmp.eq.s32.totalorder %s16, 0
      %p117 = por %p115, %p116
      %p118 = scmp.ne.s32.totalorder %s104, %s105
      %p119 = scmp.eq.s32.totalorder %s17, 3
      %p120 = por %p118, %p119
      %p122 = scmp.ne.s32.totalorder %s105, %s121
      %p123 = scmp.eq.s32.totalorder %s17, 0
      %p124 = por %p122, %p123
      %p125 = scmp.le.s32.totalorder 1, %s11
      %p126 = scmp.lt.s32.totalorder %s11, 5
      %p127 = pnand %p125, %p126
      %p128 = pneg %p127
      // Predicated region
      $region9: #{tpu_custom_call.1} parent=5 // pred_check
        _
      $region10: #{tpu_custom_call.1} parent=5 // pred_check_branch
        %130 = sbr.rel (%p127) target = $region12
      $region11: #{tpu_custom_call.1} parent=5 // pred_region
        %s131 = ssub.s32 %s11, 1
      $region12: #{tpu_custom_call.1} parent=5 // pred_fallthru
        _
      %p132 = scmp.lt.s32.totalorder %s11, 4
      // Predicated region
      $region13: #{tpu_custom_call.1} parent=5 // pred_check
        %p133 = pneg %p132
      $region14: #{tpu_custom_call.1} parent=5 // pred_check_branch
        %135 = sbr.rel (%p133) target = $region16
      $region15: #{tpu_custom_call.1} parent=5 // pred_region
        // Predicated region
        $region17: #{tpu_custom_call.1} parent=15 // pred_check
          %p136 = pneg %p51
        $region18: #{tpu_custom_call.1} parent=15 // pred_check_branch
          %138 = sbr.rel (%p136) target = $region20
        $region19: #{tpu_custom_call.1} parent=15 // pred_region
          %s139 = smul.u32 %s18, 2
          %s140 = sadd.s32 %s139, %s19
          %p141 = scmp.lt.s32.totalorder %s140, 2
          %s142 = scalar_select %p141, %s140, 2
          %p143 = scmp.lt.s32.totalorder %s142, 2
          %s144 = scalar_select %p143, %s142, 2
          %s145 = smul.addr %s144, 8
          %s146 = scalar_lea.vmem %s0, %s145
          %s147 = smul.u32 %s18, 2
          %s148 = sadd.s32 %s147, %s19
          %p149 = scmp.lt.s32.totalorder %s148, 2
          %s150 = scalar_select %p149, %s148, 2
        $region20: #{tpu_custom_call.1} parent=15 // pred_fallthru
          _
        // Predicated region
        $region21: #{tpu_custom_call.1} parent=15 // pred_check
          %p151 = pneg %p85
        $region22: #{tpu_custom_call.1} parent=15 // pred_check_branch
          %153 = sbr.rel (%p151) target = $region24
        $region23: #{tpu_custom_call.1} parent=15 // pred_region
          %s154 = smul.u32 %s18, 2
          %s155 = sadd.s32 %s154, %s19
          %p156 = scmp.lt.s32.totalorder %s155, 2
          %s157 = scalar_select %p156, %s155, 2
          %p158 = scmp.lt.s32.totalorder %s157, 2
          %s159 = scalar_select %p158, %s157, 2
          %s160 = smul.addr %s159, 8
          %s161 = scalar_lea.vmem %s1, %s160
          %s162 = smul.u32 %s18, 2
          %s163 = sadd.s32 %s162, %s19
          %p164 = scmp.lt.s32.totalorder %s163, 2
          %s165 = scalar_select %p164, %s163, 2
        $region24: #{tpu_custom_call.1} parent=15 // pred_fallthru
          _
      $region16: #{tpu_custom_call.1} parent=5 // pred_fallthru
        _
      %p166 = scmp.le.s32.totalorder 1, %s11
      %p167 = scmp.lt.s32.totalorder %s11, 5
      %p168 = pnand %p166, %p167
      %p169 = pneg %p168
      // Predicated region
      $region25: #{tpu_custom_call.1} parent=5 // pred_check
        _
      $region26: #{tpu_custom_call.1} parent=5 // pred_check_branch
        %171 = sbr.rel (%p168) target = $region28
      $region27: #{tpu_custom_call.1} parent=5 // pred_region
        %s172 = ssub.s32 %s11, 1
        %s173 = smul.u32 %s20, 2
        %s174 = sadd.s32 %s173, %s21
        %p175 = scmp.lt.s32.totalorder %s174, 2
        %s176 = scalar_select %p175, %s174, 2
        %p177 = scmp.lt.s32.totalorder %s176, 2
        %s178 = scalar_select %p177, %s176, 2
        %s179 = smul.addr %s178, 8
        %s180 = scalar_lea.vmem %s0, %s179
        %p181 = pneg %p57
        %p182 = pneg %p54
        %s183 = smul.u32 %s20, 2
        %s184 = sadd.s32 %s183, %s21
        %p185 = scmp.lt.s32.totalorder %s184, 2
        %s186 = scalar_select %p185, %s184, 2
        %p187 = scmp.lt.s32.totalorder %s186, 2
        %s188 = scalar_select %p187, %s186, 2
        %s189 = smul.addr %s188, 8
        %s190 = scalar_lea.vmem %s1, %s189
        %p191 = pneg %p91
        %p192 = pneg %p88
        %p193 = pneg %p117
        %p194 = pneg %p114
        %s195 = sand.u32 %s104, 1
        %s196 = scalar_lea.sflag [#allocation5], %s195
        %s197 = sand.u32 %s104, 1
        %s198 = smul.addr %s197, 8
        %s199 = scalar_lea.vmem [#allocation4], %s198
        %s200 = smul.u32 %s20, 2
        %s201 = sadd.s32 %s200, %s21
        %p202 = scmp.lt.s32.totalorder %s201, 2
        %s203 = scalar_select %p202, %s201, 2
        %p204 = scmp.lt.s32.totalorder %s203, 2
        %s205 = scalar_select %p204, %s203, 2
        %s206 = smul.addr %s205, 8
        %s207 = scalar_lea.vmem %s0, %s206
        %s208 = smul.u32 %s20, 2
        %s209 = sadd.s32 %s208, %s21
        %p210 = scmp.lt.s32.totalorder %s209, 2
        %s211 = scalar_select %p210, %s209, 2
        %s212 = smul.u32 %s20, 2
        %s213 = sadd.s32 %s212, %s21
        %p214 = scmp.lt.s32.totalorder %s213, 2
        %s215 = scalar_select %p214, %s213, 2
        %p216 = scmp.lt.s32.totalorder %s215, 2
        %s217 = scalar_select %p216, %s215, 2
        %s218 = smul.addr %s217, 8
        %s219 = scalar_lea.vmem %s1, %s218
        %s220 = smul.u32 %s20, 2
        %s221 = sadd.s32 %s220, %s21
        %p222 = scmp.lt.s32.totalorder %s221, 2
        %s223 = scalar_select %p222, %s221, 2
        %p224 = scmp.eq.s32.totalorder %s21, 0
        // Predicated region
        $region29: #{tpu_custom_call.1} parent=27 // pred_check
          %p225 = pneg %p224
        $region30: #{tpu_custom_call.1} parent=27 // pred_check_branch
          %227 = sbr.rel (%p225) target = $region32
        $region31: #{tpu_custom_call.1} parent=27 // pred_region
          %vm228 = vcmask 0
          %229 = vst.msk [vmem:[#allocation2] sm:$0x1] %vm228, 0.0
          %230 = vst.msk [vmem:[#allocation3] sm:$0x1] %vm228, 0.0
        $region32: #{tpu_custom_call.1} parent=27 // pred_fallthru
          _
        %v231 = vld [vmem:[%s207] sm:$0xff]
        %v232 = vld [vmem:[%s219] sm:$0xff]
        %s233 = smul.u32 %s20, 2
        %s234 = sadd.s32 %s233, %s21
        %v235 = vlaneseq
        %v236 = vshrl.u32 %v235, 7
        %s237 = smul.u32 %s234, 8
        %v238 = vstv %s237
        %v239 = vadd.s32 %v236, %v238
        %vm240 = vcmp.lt.s32.totalorder %v239, 20
        %vm241 = vcmp.ne.s32.totalorder %v232, 4294967196
        %vm242 = vmand %vm240, %vm241
        %v243 = vlaneseq
        %v244 = vand.u32 %v243, 127
        %245 = vset.pattern.permute.xlu0 0
        %246 = vperm.xlu0 %245, %v232
        %v247 = vpop.permute.xlu0 %246
        %vm248 = vcmp.eq.s32.totalorder %v244, %v247
        %v249 = vsel %vm248, %v231, 0.0
        %vm250 = vcmask 261120
        %v251 = vsel %vm250, %v249, 0.0
        %252 = vadd.xlane.f32.xlu0 %v251
        %v253 = vpop.xlane.xlu0 %252
        %v254 = vsel %vm250, %v231, -inf
        %255 = vmax.xlane.f32.xlu0 %v254
        %v256 = vpop.xlane.xlu0 %255
        %v257 = vsub.f32 %v231, %v256
        %v258 = vmul.f32 %v257, 1.442695
        %v259 = vpow.pop %v258
        %v260 = vsel %vm250, %v259, 0.0
        %261 = vadd.xlane.f32.xlu0 %v260
        %v262 = vpop.xlane.xlu0 %261
        %v263 = vlog2.pop %v262
        %v264 = vmul.f32 %v263, 0.6931472
        %v265 = vadd.f32 %v256, %v264
        %v266 = vsub.f32 %v265, %v253
        %v267 = vsel %vm242, %v266, 0.0
        %v268 = vld [vmem:[#allocation2] sm:$0x1]
        %vm269 = vcmask 7168
        %v270 = vsel %vm269, %v267, 0.0
        %271 = vadd.xlane.f32.xlu0 %v270
        %v272 = vpop.xlane.xlu0 %271
        %v273 = vrot.slane %v272, 4
        %v274 = vadd.f32 %v272, %v273
        %v275 = vrot.slane %v274, 2
        %v276 = vadd.f32 %v274, %v275
        %v277 = vrot.slane %v276, 1
        %v278 = vadd.f32 %v276, %v277
        %s279 = vtos %v278
        %v280 = vstv %s279
        %v281 = vadd.f32 %v268, %v280
        %vm282 = vcmask 0
        %283 = vst.msk [vmem:[#allocation2] sm:$0x1] %vm282, %v281
        %v284 = vld [vmem:[#allocation3] sm:$0x1]
        %v285 = vsel %vm242, 1, 0
        %v286 = vcvt.s32.f32 %v285
        %v287 = vsel %vm269, %v286, 0.0
        %288 = vadd.xlane.f32.xlu0 %v287
        %v289 = vpop.xlane.xlu0 %288
        %v290 = vrot.slane %v289, 4
        %v291 = vadd.f32 %v289, %v290
        %v292 = vrot.slane %v291, 2
        %v293 = vadd.f32 %v291, %v292
        %v294 = vrot.slane %v293, 1
        %v295 = vadd.f32 %v293, %v294
        %s296 = vtos %v295
        %v297 = vstv %s296
        %v298 = vadd.f32 %v284, %v297
        %299 = vst.msk [vmem:[#allocation3] sm:$0x1] %vm282, %v298
        %p300 = scmp.eq.s32.totalorder %s21, 1
        // Predicated region
        $region33: #{tpu_custom_call.1} parent=27 // pred_check
          %p301 = pneg %p300
        $region34: #{tpu_custom_call.1} parent=27 // pred_check_branch
          %303 = sbr.rel (%p301) target = $region36
        $region35: #{tpu_custom_call.1} parent=27 // pred_region
          %v304 = vld [vmem:[#allocation2] sm:$0x1]
          %s305 = vtos %v304
          %v306 = vld [vmem:[#allocation3] sm:$0x1]
          %s307 = vtos %v306
          %vm308 = vcmp.eq.s32.totalorder %v236, 0
          %vm309 = vcmp.eq.s32.totalorder %v244, 0
          %vm310 = vmand %vm308, %vm309
          %vm311 = vcmp.eq.s32.totalorder %v244, 1
          %vm312 = vmand %vm308, %vm311
          %v313 = vstv %s307
          %v314 = vsel %vm312, %v313, 0.0
          %v315 = vstv %s305
          %v316 = vsel %vm310, %v315, %v314
          %317 = vst [vmem:[%s199] sm:$0xff] %v316
        $region36: #{tpu_custom_call.1} parent=27 // pred_fallthru
          _
        %s318 = sand.u32 %s104, 1
        %s319 = scalar_lea.sflag [#allocation5], %s318
        %s320 = sand.u32 %s104, 1
        %s321 = smul.addr %s320, 8
        %s322 = scalar_lea.vmem [#allocation4], %s321
        // Predicated region
        $region37: #{tpu_custom_call.1} parent=27 // pred_check
          %p323 = pneg %p114
        $region38: #{tpu_custom_call.1} parent=27 // pred_check_branch
          %325 = sbr.rel (%p323) target = $region40
        $region39: #{tpu_custom_call.1} parent=27 // pred_region
          %s327 = ssub.s32 128, 128
          %328 = vsyncadd %s319, %s327
          %s329 = smul.addr %s20, 128
          %s330 = scalar_lea.hbm %s2, %s329
          %s332 = sshll.u32 %s322, 4
          %s333 = int_to_ptr.vmem [resolvable:$true] %s332
          %335 = dma.vmem_to_hbm [thread:$0]  %s333, 128, %s330, %s319
        $region40: #{tpu_custom_call.1} parent=27 // pred_fallthru
          _
      $region28: #{tpu_custom_call.1} parent=5 // pred_fallthru
        _
      %p336 = scmp.le.s32.totalorder 2, %s11
      // Predicated region
      $region41: #{tpu_custom_call.1} parent=5 // pred_check
        %p337 = pneg %p336
      $region42: #{tpu_custom_call.1} parent=5 // pred_check_branch
        %339 = sbr.rel (%p337) target = $region44
      $region43: #{tpu_custom_call.1} parent=5 // pred_region
        %s340 = ssub.s32 %s11, 2
        // Predicated region
        $region45: #{tpu_custom_call.1} parent=43 // pred_check
          %p341 = pneg %p120
        $region46: #{tpu_custom_call.1} parent=43 // pred_check_branch
          %343 = sbr.rel (%p341) target = $region48
        $region47: #{tpu_custom_call.1} parent=43 // pred_region
          %s344 = sand.u32 %s105, 1
          %s345 = scalar_lea.sflag [#allocation5], %s344
          %s346 = sand.u32 %s105, 1
          %s347 = smul.addr %s346, 8
          %s348 = scalar_lea.vmem [#allocation4], %s347
          %349 = dma.done %s345, 128
        $region48: #{tpu_custom_call.1} parent=43 // pred_fallthru
          _
      $region44: #{tpu_custom_call.1} parent=5 // pred_fallthru
        _
    $region6: #{tpu_custom_call.1} parent=1 // loop_footer
      %s15 = sadd.s32 1, %s11
    $region7: #{tpu_custom_call.1} parent=1 // loop_footer_branch
      %10 = sbr.rel target = $region3
    $region8: #{tpu_custom_call.1} parent=1 // loop_exit
      _
    %350 = vsyncpa [#allocation5], 1
    %s351 = scalar_lea.sflag [#allocation5], 1
    %352 = vsyncpa %s351, 1

</llo_original>
